<compile_context>
chip_gen: v5e
topology: v5e:2x2
jax: 0.10.0
libtpu: 0.0.40
codegen_flags: <defaults>
</compile_context>

<pallas_src>
import jax
import jax.numpy as jnp
from jax.experimental import pallas as pl
from jax.experimental.pallas import tpu as pltpu


def _round_up(x, m):
    return ((x + m - 1) // m) * m


def _make_kernel(S, TL, L_valid):
    """S: sample_num (sublane extent), TL: lane tile, L_valid: real #columns."""

    def kernel(margin_ref, o_ref, y_ref, loss_ref, corr_ref):
        margin = margin_ref[0, 0]
        o = o_ref[...]                     # (S, TL) f32; sublanes = j, lanes = (i,k)
        y = y_ref[...]

        # Lane-validity mask for this block (zero-padded columns must not count).
        g = pl.program_id(0)
        lane = jax.lax.broadcasted_iota(jnp.int32, (1, TL), 1)
        valid = (g * TL + lane) < L_valid  # (1, TL) bool

        # ---- pairwise max-margin hinge loss (hot loop) ----
        acc = jnp.zeros((S, TL), jnp.float32)

        if S <= 16:
            # sample_num is small: static unroll; anchor row is a static
            # sublane slice of the loaded block, broadcast by the VPU.
            for j in range(S):
                oj = o[j:j + 1, :]         # (1, TL)
                yj = y[j:j + 1, :]
                acc = acc + jnp.maximum(margin - (oj - o) * (yj - y), 0.0)
        else:
            # larger S: dynamic sublane load straight from VMEM keeps live
            # ranges bounded (unit-stride pl.ds works in interpret mode too).
            def step(j, a):
                oj = o_ref[pl.ds(j, 1), :]
                yj = y_ref[pl.ds(j, 1), :]
                return a + jnp.maximum(margin - (oj - o) * (yj - y), 0.0)
            acc = jax.lax.fori_loop(0, S, step, acc, unroll=4)

        col_loss = jnp.sum(acc, axis=0, keepdims=True)           # (1, TL)
        loss_ref[...] = jnp.where(valid, col_loss, 0.0)

        # ---- per-column argmax match count (flat_accuracy over all slices) ----
        iota_j = jax.lax.broadcasted_iota(jnp.int32, (S, TL), 0)
        o_max = jnp.max(o, axis=0, keepdims=True)
        y_max = jnp.max(y, axis=0, keepdims=True)
        # first index attaining the max (matches torch argmax tie-breaking)
        o_idx = jnp.min(jnp.where(o == o_max, iota_j, S), axis=0, keepdims=True)
        y_idx = jnp.min(jnp.where(y == y_max, iota_j, S), axis=0, keepdims=True)
        match = jnp.logical_and(o_idx == y_idx, valid)            # (1, TL)
        corr_ref[...] = match.astype(jnp.int32)

    return kernel


def pairwise_max_margin_hinge_loss(out_matrix, label_matrix, margin, sample_num):
    """out_matrix, label_matrix: (sample_num, sample_num, K)."""
    S1, S2, K = out_matrix.shape
    assert S1 == sample_num and S2 == sample_num
    S = sample_num
    L = S * K

    # Layout glue: B[j, i*K + k] = o[i, j, k]  ->  (S, S*K), lanes = (i,k).
    # TODO(synk): if the producer emits this (S, S*K) layout directly, this
    # one transpose pass over HBM disappears entirely.
    o2 = jnp.transpose(out_matrix, (1, 0, 2)).reshape(S, L).astype(jnp.float32)
    y2 = jnp.transpose(label_matrix, (1, 0, 2)).reshape(S, L).astype(jnp.float32)

    # Lane tiling: multiples of 128, up to 1024 lanes per block.
    TL = min(1024, _round_up(L, 128))
    G = -(-L // TL)
    L_pad = G * TL
    if L_pad != L:
        o2 = jnp.pad(o2, ((0, 0), (0, L_pad - L)))
        y2 = jnp.pad(y2, ((0, 0), (0, L_pad - L)))

    margin_arr = jnp.full((1, 1), margin, dtype=jnp.float32)
    kernel = _make_kernel(S, TL, L)

    loss_vec, corr_vec = pl.pallas_call(
        kernel,
        grid=(G,),
        out_shape=(
            jax.ShapeDtypeStruct((1, L_pad), jnp.float32),
            jax.ShapeDtypeStruct((1, L_pad), jnp.int32),
        ),
        in_specs=[
            pl.BlockSpec(memory_space=pltpu.MemorySpace.SMEM),     # margin (1,1)
            pl.BlockSpec((S, TL), lambda g: (0, g)),               # out   (S, L_pad)
            pl.BlockSpec((S, TL), lambda g: (0, g)),               # label (S, L_pad)
        ],
        out_specs=(
            pl.BlockSpec((1, TL), lambda g: (0, g)),               # per-column loss
            pl.BlockSpec((1, TL), lambda g: (0, g)),               # per-column match
        ),
        compiler_params=pltpu.CompilerParams(
            dimension_semantics=("parallel",)),
    )(margin_arr, o2, y2)

    # Per-lane partials summed in the wrapper (f32 partial accumulation).
    return jnp.sum(loss_vec), jnp.sum(corr_vec)


def _reference(out_matrix, label_matrix, margin, sample_num):
    """Pure-NumPy mirror of the PyTorch loops, for correctness checking."""
    import numpy as np
    o = np.asarray(out_matrix, dtype=np.float32)
    y = np.asarray(label_matrix, dtype=np.float32)
    K = o.shape[2]
    loss = 0.0
    corr = 0
    for k in range(K):
        ok, yk = o[:, :, k], y[:, :, k]
        corr += int(np.sum(np.argmax(ok, 1) == np.argmax(yk, 1)))
        for i in range(sample_num):
            orow, yrow = ok[i], yk[i]
            for j in range(sample_num):
                t1 = orow[j] - orow
                t2 = yrow[j] - yrow
                loss += float(np.sum(np.maximum(margin - t1 * t2, 0.0)))
    return loss, corr


if __name__ == "__main__":
    sample_num = 5
    K = 8            # number of slices along dim 2
    margin = 1.0

    key = jax.random.PRNGKey(0)
    k1, k2 = jax.random.split(key)
    out_matrix = jax.random.normal(k1, (sample_num, sample_num, K), dtype=jnp.float32)
    label_matrix = jax.random.normal(k2, (sample_num, sample_num, K), dtype=jnp.float32)

    loss, corr = pairwise_max_margin_hinge_loss(out_matrix, label_matrix, margin, sample_num)
    loss = jax.block_until_ready(loss)
    corr = jax.block_until_ready(corr)

    ref_loss, ref_corr = _reference(out_matrix, label_matrix, margin, sample_num)
    assert abs(float(loss) - ref_loss) < 1e-3 * max(1.0, abs(ref_loss)), (float(loss), ref_loss)
    assert int(corr) == ref_corr, (int(corr), ref_corr)

    print("KERNEL_OK")
</pallas_src>

<mosaic_0001>
module attributes {stable_mosaic.version = 11 : i64} {
  func.func @kernel(%arg0: i32, %arg1: memref<1x1xf32, #tpu.memory_space<smem>>, %arg2: memref<5x128xf32, #tpu.memory_space<vmem>>, %arg3: memref<5x128xf32, #tpu.memory_space<vmem>>, %arg4: memref<1x128xf32, #tpu.memory_space<vmem>>, %arg5: memref<1x128xi32, #tpu.memory_space<vmem>>) attributes {dimension_semantics = [#tpu.dimension_semantics<parallel>], iteration_bounds = array<i64: 1>, scalar_prefetch = 0 : i64, scratch_operands = 0 : i64, tpu.core_type = #tpu.core_type<tc>, window_params = [{transform_indices = @transform_0, window_bounds = array<i64: 1, 1>}, {transform_indices = @transform_1, window_bounds = array<i64: 5, 128>}, {transform_indices = @transform_2, window_bounds = array<i64: 5, 128>}, {transform_indices = @transform_3, window_bounds = array<i64: 1, 128>}, {transform_indices = @transform_4, window_bounds = array<i64: 1, 128>}]} {
    %c0 = arith.constant 0 : index
    %c0_0 = arith.constant 0 : index
    %0 = memref.load %arg1[%c0, %c0_0] : memref<1x1xf32, #tpu.memory_space<smem>>
    %c0_1 = arith.constant 0 : index
    %c0_2 = arith.constant 0 : index
    %1 = vector.load %arg2[%c0_1, %c0_2] : memref<5x128xf32, #tpu.memory_space<vmem>>, vector<5x128xf32>
    %c0_3 = arith.constant 0 : index
    %c0_4 = arith.constant 0 : index
    %2 = vector.load %arg3[%c0_3, %c0_4] : memref<5x128xf32, #tpu.memory_space<vmem>>, vector<5x128xf32>
    %3 = tpu.iota {dimensions = array<i32: 1>} : vector<1x128xi32>
    %c128_i32 = arith.constant 128 : i32
    %4 = arith.muli %arg0, %c128_i32 : i32
    %5 = vector.broadcast %4 : i32 to vector<1x128xi32>
    %6 = arith.addi %5, %3 : vector<1x128xi32>
    %c40_i32 = arith.constant 40 : i32
    %7 = vector.broadcast %c40_i32 : i32 to vector<1x128xi32>
    %8 = arith.cmpi slt, %6, %7 : vector<1x128xi32>
    %cst = arith.constant 0.000000e+00 : f32
    %9 = vector.broadcast %cst : f32 to vector<5x128xf32>
    %10 = vector.extract_strided_slice %1 {offsets = [0, 0], sizes = [1, 128], strides = [1, 1]} : vector<5x128xf32> to vector<1x128xf32>
    %11 = vector.extract_strided_slice %2 {offsets = [0, 0], sizes = [1, 128], strides = [1, 1]} : vector<5x128xf32> to vector<1x128xf32>
    %12 = vector.broadcast %10 : vector<1x128xf32> to vector<5x128xf32>
    %13 = arith.subf %12, %1 : vector<5x128xf32>
    %14 = vector.broadcast %11 : vector<1x128xf32> to vector<5x128xf32>
    %15 = arith.subf %14, %2 : vector<5x128xf32>
    %16 = arith.mulf %13, %15 : vector<5x128xf32>
    %17 = vector.broadcast %0 : f32 to vector<5x128xf32>
    %18 = arith.subf %17, %16 : vector<5x128xf32>
    %cst_5 = arith.constant 0.000000e+00 : f32
    %19 = vector.broadcast %cst_5 : f32 to vector<5x128xf32>
    %20 = arith.maximumf %18, %19 : vector<5x128xf32>
    %21 = arith.addf %9, %20 : vector<5x128xf32>
    %22 = vector.extract_strided_slice %1 {offsets = [1, 0], sizes = [1, 128], strides = [1, 1]} : vector<5x128xf32> to vector<1x128xf32>
    %23 = vector.extract_strided_slice %2 {offsets = [1, 0], sizes = [1, 128], strides = [1, 1]} : vector<5x128xf32> to vector<1x128xf32>
    %24 = vector.broadcast %22 : vector<1x128xf32> to vector<5x128xf32>
    %25 = arith.subf %24, %1 : vector<5x128xf32>
    %26 = vector.broadcast %23 : vector<1x128xf32> to vector<5x128xf32>
    %27 = arith.subf %26, %2 : vector<5x128xf32>
    %28 = arith.mulf %25, %27 : vector<5x128xf32>
    %29 = vector.broadcast %0 : f32 to vector<5x128xf32>
    %30 = arith.subf %29, %28 : vector<5x128xf32>
    %cst_6 = arith.constant 0.000000e+00 : f32
    %31 = vector.broadcast %cst_6 : f32 to vector<5x128xf32>
    %32 = arith.maximumf %30, %31 : vector<5x128xf32>
    %33 = arith.addf %21, %32 : vector<5x128xf32>
    %34 = vector.extract_strided_slice %1 {offsets = [2, 0], sizes = [1, 128], strides = [1, 1]} : vector<5x128xf32> to vector<1x128xf32>
    %35 = vector.extract_strided_slice %2 {offsets = [2, 0], sizes = [1, 128], strides = [1, 1]} : vector<5x128xf32> to vector<1x128xf32>
    %36 = vector.broadcast %34 : vector<1x128xf32> to vector<5x128xf32>
    %37 = arith.subf %36, %1 : vector<5x128xf32>
    %38 = vector.broadcast %35 : vector<1x128xf32> to vector<5x128xf32>
    %39 = arith.subf %38, %2 : vector<5x128xf32>
    %40 = arith.mulf %37, %39 : vector<5x128xf32>
    %41 = vector.broadcast %0 : f32 to vector<5x128xf32>
    %42 = arith.subf %41, %40 : vector<5x128xf32>
    %cst_7 = arith.constant 0.000000e+00 : f32
    %43 = vector.broadcast %cst_7 : f32 to vector<5x128xf32>
    %44 = arith.maximumf %42, %43 : vector<5x128xf32>
    %45 = arith.addf %33, %44 : vector<5x128xf32>
    %46 = vector.extract_strided_slice %1 {offsets = [3, 0], sizes = [1, 128], strides = [1, 1]} : vector<5x128xf32> to vector<1x128xf32>
    %47 = vector.extract_strided_slice %2 {offsets = [3, 0], sizes = [1, 128], strides = [1, 1]} : vector<5x128xf32> to vector<1x128xf32>
    %48 = vector.broadcast %46 : vector<1x128xf32> to vector<5x128xf32>
    %49 = arith.subf %48, %1 : vector<5x128xf32>
    %50 = vector.broadcast %47 : vector<1x128xf32> to vector<5x128xf32>
    %51 = arith.subf %50, %2 : vector<5x128xf32>
    %52 = arith.mulf %49, %51 : vector<5x128xf32>
    %53 = vector.broadcast %0 : f32 to vector<5x128xf32>
    %54 = arith.subf %53, %52 : vector<5x128xf32>
    %cst_8 = arith.constant 0.000000e+00 : f32
    %55 = vector.broadcast %cst_8 : f32 to vector<5x128xf32>
    %56 = arith.maximumf %54, %55 : vector<5x128xf32>
    %57 = arith.addf %45, %56 : vector<5x128xf32>
    %58 = vector.extract_strided_slice %1 {offsets = [4, 0], sizes = [1, 128], strides = [1, 1]} : vector<5x128xf32> to vector<1x128xf32>
    %59 = vector.extract_strided_slice %2 {offsets = [4, 0], sizes = [1, 128], strides = [1, 1]} : vector<5x128xf32> to vector<1x128xf32>
    %60 = vector.broadcast %58 : vector<1x128xf32> to vector<5x128xf32>
    %61 = arith.subf %60, %1 : vector<5x128xf32>
    %62 = vector.broadcast %59 : vector<1x128xf32> to vector<5x128xf32>
    %63 = arith.subf %62, %2 : vector<5x128xf32>
    %64 = arith.mulf %61, %63 : vector<5x128xf32>
    %65 = vector.broadcast %0 : f32 to vector<5x128xf32>
    %66 = arith.subf %65, %64 : vector<5x128xf32>
    %cst_9 = arith.constant 0.000000e+00 : f32
    %67 = vector.broadcast %cst_9 : f32 to vector<5x128xf32>
    %68 = arith.maximumf %66, %67 : vector<5x128xf32>
    %69 = arith.addf %57, %68 : vector<5x128xf32>
    %cst_10 = arith.constant dense<0.000000e+00> : vector<128xf32>
    %70 = vector.multi_reduction <add>, %69, %cst_10 [0] : vector<5x128xf32> to vector<128xf32>
    %71 = vector.shape_cast %70 : vector<128xf32> to vector<1x128xf32>
    %cst_11 = arith.constant 0.000000e+00 : f32
    %72 = vector.broadcast %cst_11 : f32 to vector<1x128xf32>
    %73 = arith.select %8, %71, %72 : vector<1x128xi1>, vector<1x128xf32>
    %c0_12 = arith.constant 0 : index
    %c0_13 = arith.constant 0 : index
    %74 = vector.load %arg4[%c0_12, %c0_13] : memref<1x128xf32, #tpu.memory_space<vmem>>, vector<1x128xf32>
    tpu.vector_store %arg4[%c0_12, %c0_13], %73 {strides = array<i32>} : memref<1x128xf32, #tpu.memory_space<vmem>>, vector<1x128xf32>,
    %75 = tpu.iota {dimensions = array<i32: 0>} : vector<5x128xi32>
    %cst_14 = arith.constant dense<0xFF800000> : vector<128xf32>
    %76 = vector.multi_reduction <maximumf>, %1, %cst_14 [0] : vector<5x128xf32> to vector<128xf32>
    %77 = vector.shape_cast %76 : vector<128xf32> to vector<1x128xf32>
    %cst_15 = arith.constant dense<0xFF800000> : vector<128xf32>
    %78 = vector.multi_reduction <maximumf>, %2, %cst_15 [0] : vector<5x128xf32> to vector<128xf32>
    %79 = vector.shape_cast %78 : vector<128xf32> to vector<1x128xf32>
    %80 = vector.broadcast %77 : vector<1x128xf32> to vector<5x128xf32>
    %81 = arith.cmpf oeq, %1, %80 : vector<5x128xf32>
    %c5_i32 = arith.constant 5 : i32
    %82 = vector.broadcast %c5_i32 : i32 to vector<5x128xi32>
    %83 = arith.select %81, %75, %82 : vector<5x128xi1>, vector<5x128xi32>
    %cst_16 = arith.constant dense<2147483647> : vector<128xi32>
    %84 = vector.multi_reduction <minsi>, %83, %cst_16 [0] : vector<5x128xi32> to vector<128xi32>
    %85 = vector.shape_cast %84 : vector<128xi32> to vector<1x128xi32>
    %86 = vector.broadcast %79 : vector<1x128xf32> to vector<5x128xf32>
    %87 = arith.cmpf oeq, %2, %86 : vector<5x128xf32>
    %c5_i32_17 = arith.constant 5 : i32
    %88 = vector.broadcast %c5_i32_17 : i32 to vector<5x128xi32>
    %89 = arith.select %87, %75, %88 : vector<5x128xi1>, vector<5x128xi32>
    %cst_18 = arith.constant dense<2147483647> : vector<128xi32>
    %90 = vector.multi_reduction <minsi>, %89, %cst_18 [0] : vector<5x128xi32> to vector<128xi32>
    %91 = vector.shape_cast %90 : vector<128xi32> to vector<1x128xi32>
    %92 = arith.cmpi eq, %85, %91 : vector<1x128xi32>
    %93 = arith.andi %92, %8 : vector<1x128xi1>
    %94 = arith.extui %93 : vector<1x128xi1> to vector<1x128xi32>
    %c0_19 = arith.constant 0 : index
    %c0_20 = arith.constant 0 : index
    %95 = vector.load %arg5[%c0_19, %c0_20] : memref<1x128xi32, #tpu.memory_space<vmem>>, vector<1x128xi32>
    tpu.vector_store %arg5[%c0_19, %c0_20], %94 {strides = array<i32>} : memref<1x128xi32, #tpu.memory_space<vmem>>, vector<1x128xi32>,
    return
  }
  func.func @transform_0(%arg0: i32) -> (i32, i32) {
    %c0_i32 = arith.constant 0 : i32
    %c0_i32_0 = arith.constant 0 : i32
    %c0_i32_1 = arith.constant 0 : i32
    return %c0_i32, %c0_i32_0 : i32, i32
  }
  func.func @transform_1(%arg0: i32) -> (i32, i32) {
    %c0_i32 = arith.constant 0 : i32
    %c0_i32_0 = arith.constant 0 : i32
    return %c0_i32, %arg0 : i32, i32
  }
  func.func @transform_2(%arg0: i32) -> (i32, i32) {
    %c0_i32 = arith.constant 0 : i32
    %c0_i32_0 = arith.constant 0 : i32
    return %c0_i32, %arg0 : i32, i32
  }
  func.func @transform_3(%arg0: i32) -> (i32, i32) {
    %c0_i32 = arith.constant 0 : i32
    %c0_i32_0 = arith.constant 0 : i32
    return %c0_i32, %arg0 : i32, i32
  }
  func.func @transform_4(%arg0: i32) -> (i32, i32) {
    %c0_i32 = arith.constant 0 : i32
    %c0_i32_0 = arith.constant 0 : i32
    return %c0_i32, %arg0 : i32, i32
  }
}

</mosaic_0001>

<llo_original>
// kernel: tpu_custom_call.1
$region0: #{tpu_custom_call.1}
  #allocation0 [shape = 'u32[]', space=smem, size = 0x4, offset = 0x4, fixed_abs, tag = 'smem constant byte address 0x4 - core index']
  #allocation1 [shape = 'u32[72,128]{1,0:T(1,128)}', space=vmem, size = 0x9000, scoped, tag = 'internal scratch']
  #allocation2 [shape = 'f32[1,1]{1,0:T(1,128)S(6)}', space=smem, size = 0x200, scoped, tag = 'scoped memory for tpu_custom_call.1']
  %s0 = inlined_call_operand.<no memory space> [shape: f32[1,1], index: 0, kind: input, shape index: {}]
  %s1 = inlined_call_operand.hbm [shape: f32[5,128], index: 1, kind: input, shape index: {}]
  %s2 = inlined_call_operand.hbm [shape: f32[5,128], index: 2, kind: input, shape index: {}]
  %s3 = inlined_call_operand.hbm [shape: f32[1,128], index: 3, kind: output, shape index: {0}]
  %s4 = inlined_call_operand.hbm [shape: s32[1,128], index: 4, kind: output, shape index: {1}]
  %5 = xla_tuple %s3, %s4
  %s6 = sld [smem:[#allocation0]]
  $region38: #{tpu_custom_call.1} parent=0
    _
  %s8 = ssub.s32 1, %s6
  %s9 = scalar_select 0, %s8, %s6
  %10 = sst [smem:[#allocation2]] %s0
  $region1: #{tpu_custom_call.1} parent=0
    #allocation3 [shape = 'u8[4096]{0}', space=vmem, size = 0x1000, scoped, tag = 'input window, operand 1, single buffered']
    #allocation4 [shape = 's32[1]{0}', space=sflag, size = 0x4, scoped, tag = 'scoped memory for tpu_custom_call.1']
    #allocation5 [shape = 's32[1]{0}', space=sflag, size = 0x4, scoped, tag = 'scoped memory for tpu_custom_call.1']
    #allocation6 [shape = 'u8[4096]{0}', space=vmem, size = 0x1000, scoped, tag = 'input window, operand 2, single buffered']
    #allocation7 [shape = 's32[1]{0}', space=sflag, size = 0x4, scoped, tag = 'scoped memory for tpu_custom_call.1']
    #allocation8 [shape = 'u8[512]{0}', space=vmem, size = 0x400, scoped, tag = 'output window, operand 0, single buffered']
    #allocation9 [shape = 'u8[512]{0}', space=vmem, size = 0x400, scoped, tag = 'output window, operand 1, single buffered']
    #allocation10 [shape = 's32[1]{0}', space=sflag, size = 0x4, scoped, tag = 'scoped memory for tpu_custom_call.1']
    %11 = vsyncpa [#allocation4], 0
    %12 = vsyncpa [#allocation7], 0
    %13 = vsyncpa [#allocation5], 0
    %14 = vsyncpa [#allocation10], 0
    // Predicated region
    $region2: #{tpu_custom_call.1} parent=1 // pred_check
      _
    $region3: #{tpu_custom_call.1} parent=1 // pred_check_branch
      %16 = sbr.rel (0) target = $region5
    $region4: #{tpu_custom_call.1} parent=1 // pred_region
      _
    $region5: #{tpu_custom_call.1} parent=1 // pred_fallthru
      _
    // Predicated region
    $region6: #{tpu_custom_call.1} parent=1 // pred_check
      _
    $region7: #{tpu_custom_call.1} parent=1 // pred_check_branch
      %18 = sbr.rel (0) target = $region9
    $region8: #{tpu_custom_call.1} parent=1 // pred_region
      %20 = vsyncadd [#allocation4], 0
      %s22 = sshll.u32 %s1, 4
      %s23 = int_to_ptr.hbm [resolvable:$true] %s22
      %s24 = sshll.u32 [#allocation3], 4
      %s25 = int_to_ptr.vmem [resolvable:$true] %s24
      %27 = dma.hbm_to_vmem [thread:$0]  %s23, 128, %s25, [#allocation4]
    $region9: #{tpu_custom_call.1} parent=1 // pred_fallthru
      _
    // Predicated region
    $region10: #{tpu_custom_call.1} parent=1 // pred_check
      _
    $region11: #{tpu_custom_call.1} parent=1 // pred_check_branch
      %29 = sbr.rel (0) target = $region13
    $region12: #{tpu_custom_call.1} parent=1 // pred_region
      %31 = vsyncadd [#allocation7], 0
      %s33 = sshll.u32 %s2, 4
      %s34 = int_to_ptr.hbm [resolvable:$true] %s33
      %s35 = sshll.u32 [#allocation6], 4
      %s36 = int_to_ptr.vmem [resolvable:$true] %s35
      %38 = dma.hbm_to_vmem [thread:$0]  %s34, 128, %s36, [#allocation7]
    $region13: #{tpu_custom_call.1} parent=1 // pred_fallthru
      _
    // Predicated region
    $region14: #{tpu_custom_call.1} parent=1 // pred_check
      _
    $region15: #{tpu_custom_call.1} parent=1 // pred_check_branch
      %40 = sbr.rel (0) target = $region17
    $region16: #{tpu_custom_call.1} parent=1 // pred_region
      %42 = dma.done [#allocation4], 128
    $region17: #{tpu_custom_call.1} parent=1 // pred_fallthru
      _
    // Predicated region
    $region18: #{tpu_custom_call.1} parent=1 // pred_check
      _
    $region19: #{tpu_custom_call.1} parent=1 // pred_check_branch
      %44 = sbr.rel (0) target = $region21
    $region20: #{tpu_custom_call.1} parent=1 // pred_region
      %46 = dma.done [#allocation7], 128
    $region21: #{tpu_custom_call.1} parent=1 // pred_fallthru
      _
    %s47 = sld [smem:[#allocation2]]
    %v48 = vld [vmem:[#allocation3] sm:$0x1f]
    %v49 = vld [vmem:[#allocation6] sm:$0x1f]
    %v50 = vlaneseq
    %v51 = vand.u32 %v50, 127
    %s52 = smul.u32 0, 128
    %v53 = vstv %s52
    %v54 = vadd.s32 %v53, %v51
    %vm55 = vcmp.lt.s32.totalorder %v54, 40
    %v56 = vperm.slane %v48, 0
    %v57 = vsub.f32 %v56, %v48
    %v58 = vperm.slane %v49, 0
    %v59 = vsub.f32 %v58, %v49
    %v60 = vmul.f32 %v57, %v59
    %v61 = vstv %s47
    %v62 = vsub.f32 %v61, %v60
    %v63 = vmax.f32 %v62, 0.0
    %v64 = vadd.f32 %v63, 0.0
    %v65 = vperm.slane %v48, 1
    %v66 = vsub.f32 %v65, %v48
    %v67 = vperm.slane %v49, 1
    %v68 = vsub.f32 %v67, %v49
    %v69 = vmul.f32 %v66, %v68
    %v70 = vsub.f32 %v61, %v69
    %v71 = vmax.f32 %v70, 0.0
    %v72 = vadd.f32 %v64, %v71
    %v73 = vperm.slane %v48, 2
    %v74 = vsub.f32 %v73, %v48
    %v75 = vperm.slane %v49, 2
    %v76 = vsub.f32 %v75, %v49
    %v77 = vmul.f32 %v74, %v76
    %v78 = vsub.f32 %v61, %v77
    %v79 = vmax.f32 %v78, 0.0
    %v80 = vadd.f32 %v72, %v79
    %v81 = vperm.slane %v48, 3
    %v82 = vsub.f32 %v81, %v48
    %v83 = vperm.slane %v49, 3
    %v84 = vsub.f32 %v83, %v49
    %v85 = vmul.f32 %v82, %v84
    %v86 = vsub.f32 %v61, %v85
    %v87 = vmax.f32 %v86, 0.0
    %v88 = vadd.f32 %v80, %v87
    %v89 = vperm.slane %v48, 4
    %v90 = vsub.f32 %v89, %v48
    %v91 = vperm.slane %v49, 4
    %v92 = vsub.f32 %v91, %v49
    %v93 = vmul.f32 %v90, %v92
    %v94 = vsub.f32 %v61, %v93
    %v95 = vmax.f32 %v94, 0.0
    %v96 = vadd.f32 %v88, %v95
    %vm97 = vcmask 1044480
    %v98 = vsel %vm97, %v96, 0.0
    %v99 = vrot.slane %v98, 4
    %v100 = vadd.f32 %v98, %v99
    %v101 = vrot.slane %v100, 2
    %v102 = vadd.f32 %v100, %v101
    %v103 = vrot.slane %v102, 1
    %v104 = vadd.f32 %v102, %v103
    %v105 = vsel %vm55, %v104, 0.0
    %106 = vst [vmem:[#allocation8] sm:$0x1] %v105
    %v107 = vlaneseq
    %v108 = vshrl.u32 %v107, 7
    %v109 = vsel %vm97, %v48, -inf
    %v110 = vrot.slane %v109, 4
    %v111 = vmax.f32 %v109, %v110
    %v112 = vrot.slane %v111, 2
    %v113 = vmax.f32 %v111, %v112
    %v114 = vrot.slane %v113, 1
    %v115 = vmax.f32 %v113, %v114
    %v116 = vsel %vm97, %v49, -inf
    %v117 = vrot.slane %v116, 4
    %v118 = vmax.f32 %v116, %v117
    %v119 = vrot.slane %v118, 2
    %v120 = vmax.f32 %v118, %v119
    %v121 = vrot.slane %v120, 1
    %v122 = vmax.f32 %v120, %v121
    %vm123 = vcmp.eq.f32.partialorder %v48, %v115
    %v124 = vsel %vm123, %v108, 5
    %v125 = vsel %vm97, %v124, 2147483647
    %v126 = vrot.slane %v125, 4
    %vm127 = vcmp.lt.s32.totalorder %v125, %v126
    %v128 = vsel %vm127, %v125, %v126
    %v129 = vrot.slane %v128, 2
    %vm130 = vcmp.lt.s32.totalorder %v128, %v129
    %v131 = vsel %vm130, %v128, %v129
    %v132 = vrot.slane %v131, 1
    %vm133 = vcmp.lt.s32.totalorder %v131, %v132
    %v134 = vsel %vm133, %v131, %v132
    %vm135 = vcmp.eq.f32.partialorder %v49, %v122
    %v136 = vsel %vm135, %v108, 5
    %v137 = vsel %vm97, %v136, 2147483647
    %v138 = vrot.slane %v137, 4
    %vm139 = vcmp.lt.s32.totalorder %v137, %v138
    %v140 = vsel %vm139, %v137, %v138
    %v141 = vrot.slane %v140, 2
    %vm142 = vcmp.lt.s32.totalorder %v140, %v141
    %v143 = vsel %vm142, %v140, %v141
    %v144 = vrot.slane %v143, 1
    %vm145 = vcmp.lt.s32.totalorder %v143, %v144
    %v146 = vsel %vm145, %v143, %v144
    %vm147 = vcmp.eq.s32.totalorder %v134, %v146
    %vm148 = vmand %vm147, %vm55
    %v149 = vsel %vm148, 1, 0
    %150 = vst [vmem:[#allocation9] sm:$0x1] %v149
    // Predicated region
    $region22: #{tpu_custom_call.1} parent=1 // pred_check
      _
    $region23: #{tpu_custom_call.1} parent=1 // pred_check_branch
      %152 = sbr.rel (0) target = $region25
    $region24: #{tpu_custom_call.1} parent=1 // pred_region
      %154 = vsyncadd [#allocation5], 0
      %s156 = sshll.u32 [#allocation8], 4
      %s157 = int_to_ptr.vmem [resolvable:$true] %s156
      %s158 = sshll.u32 %s3, 4
      %s159 = int_to_ptr.hbm [resolvable:$true] %s158
      %161 = dma.vmem_to_hbm [thread:$0]  %s157, 16, %s159, [#allocation5]
    $region25: #{tpu_custom_call.1} parent=1 // pred_fallthru
      _
    // Predicated region
    $region26: #{tpu_custom_call.1} parent=1 // pred_check
      _
    $region27: #{tpu_custom_call.1} parent=1 // pred_check_branch
      %163 = sbr.rel (0) target = $region29
    $region28: #{tpu_custom_call.1} parent=1 // pred_region
      %165 = vsyncadd [#allocation10], 0
      %s167 = sshll.u32 [#allocation9], 4
      %s168 = int_to_ptr.vmem [resolvable:$true] %s167
      %s169 = sshll.u32 %s4, 4
      %s170 = int_to_ptr.hbm [resolvable:$true] %s169
      %172 = dma.vmem_to_hbm [thread:$0]  %s168, 16, %s170, [#allocation10]
    $region29: #{tpu_custom_call.1} parent=1 // pred_fallthru
      _
    // Predicated region
    $region30: #{tpu_custom_call.1} parent=1 // pred_check
      _
    $region31: #{tpu_custom_call.1} parent=1 // pred_check_branch
      %174 = sbr.rel (0) target = $region33
    $region32: #{tpu_custom_call.1} parent=1 // pred_region
      %176 = dma.done [#allocation5], 16
    $region33: #{tpu_custom_call.1} parent=1 // pred_fallthru
      _
    // Predicated region
    $region34: #{tpu_custom_call.1} parent=1 // pred_check
      _
    $region35: #{tpu_custom_call.1} parent=1 // pred_check_branch
      %178 = sbr.rel (0) target = $region37
    $region36: #{tpu_custom_call.1} parent=1 // pred_region
      %180 = dma.done [#allocation10], 16
    $region37: #{tpu_custom_call.1} parent=1 // pred_fallthru
      _
    %181 = vsyncpa [#allocation4], 1
    %182 = vsyncpa [#allocation7], 1
    %183 = vsyncpa [#allocation5], 1
    %184 = vsyncpa [#allocation10], 1

</llo_original>
